<compile_context>
chip_gen: v7x
topology: tpu7x:2x2x1
jax: 0.10.0
libtpu: 0.0.40
codegen_flags: <defaults>
</compile_context>

<pallas_src>
import jax
import jax.numpy as jnp
from jax.experimental import pallas as pl
from jax.experimental.pallas import tpu as pltpu


# ---------------------------------------------------------------------------
# Kernel
# ---------------------------------------------------------------------------

def _add_pos_kernel(x_ref, pos_ref, o_ref):
    # x_ref/o_ref: (bb, tt, D) or (bb, 1, tl); pos_ref: (tt, D) or (1, tl).
    # Broadcast over the leading batch-block dim; cast pos in-kernel so the
    # wrapper never needs a separate slice/cast HBM pass.
    o_ref[...] = x_ref[...] + pos_ref[...].astype(x_ref.dtype)


# ---------------------------------------------------------------------------
# Tiling helpers
# ---------------------------------------------------------------------------

def _itemsize(dtype) -> int:
    return jnp.dtype(dtype).itemsize


def _sublane(dtype) -> int:
    # Sub-32-bit dtypes pack along sublanes: 8 rows/vreg for 4-byte,
    # 16 for 2-byte, 32 for 1-byte.
    return {4: 8, 2: 16, 1: 32}.get(_itemsize(dtype), 8)


def _round_up(n: int, m: int) -> int:
    return (n + m - 1) // m * m


def _vmem_budget():
    """Generation-aware (vmem_limit_bytes, per-tile byte target).

    Resident VMEM ~= 6 x tile (x, pos, out each double-buffered), so the tile
    target is limit/8, leaving headroom for compiler internal scratch.
      v7x  (64 MiB/TC)  -> limit 32 MiB, ~4 MiB tiles
      v5e/v6e (128 MiB) -> limit 64 MiB, ~8 MiB tiles
    Unknown hardware falls back to the conservative v7x numbers.
    """
    cap = None
    try:
        cap = int(getattr(pltpu.get_tpu_info(), "vmem_capacity_bytes", 0)) or None
    except Exception:
        cap = None
    if cap is None:
        cap = 64 * 1024 * 1024
    vmem_limit = min(cap // 2, 64 * 1024 * 1024)
    tile_target = max(2 * 1024 * 1024, vmem_limit // 8)
    return vmem_limit, tile_target


# ---------------------------------------------------------------------------
# Lane-aligned path: d_model % 128 == 0, index the table directly
# ---------------------------------------------------------------------------

def _lpe_lane_aligned(x, pos_table, vmem_limit, tile_target):
    B, T, D = x.shape
    x_isz = _itemsize(x.dtype)
    p_isz = _itemsize(pos_table.dtype)
    sub = max(_sublane(x.dtype), _sublane(pos_table.dtype))
    row_bytes = D * x_isz

    if T * row_bytes >= tile_target:
        # Tile the sequence dim; one batch element per block.
        tt = max(sub, (tile_target // row_bytes) // sub * sub)
        bb = 1
    else:
        # Whole sequence is far below the tile-byte target: block the batch
        # dim instead so per-grid-step overhead is amortized over bigger DMAs.
        tt = _round_up(T, sub)
        bb = min(B, max(1, tile_target // (T * row_bytes)))

    n_t = pl.cdiv(T, tt)
    n_b = pl.cdiv(B, bb)

    cost = pl.CostEstimate(
        flops=B * T * D,
        transcendentals=0,
        bytes_accessed=2 * B * T * D * x_isz + T * D * p_isz,
    )

    # NOTE: the pos BlockSpec indexes the *full* table. The final (partial)
    # t-block may read table rows >= T; those rows only pair with output rows
    # that are masked on write, so this is deliberate and safe. Do not "fix"
    # it by slicing the table in the wrapper (extra HBM pass + launch).
    return pl.pallas_call(
        _add_pos_kernel,
        out_shape=jax.ShapeDtypeStruct((B, T, D), x.dtype),
        grid_spec=pltpu.PrefetchScalarGridSpec(
            num_scalar_prefetch=0,
            # (seq tiles, batch blocks): pos block index only changes on the
            # outer axis -> its re-fetch is skipped across inner batch steps.
            grid=(n_t, n_b),
            in_specs=[
                pl.BlockSpec((bb, tt, D), lambda t, b: (b, t, 0)),
                pl.BlockSpec((tt, D), lambda t, b: (t, 0)),
            ],
            out_specs=pl.BlockSpec((bb, tt, D), lambda t, b: (b, t, 0)),
        ),
        compiler_params=pltpu.CompilerParams(
            dimension_semantics=("parallel", "parallel"),
            vmem_limit_bytes=vmem_limit,
        ),
        cost_estimate=cost,
    )(x, pos_table)


# ---------------------------------------------------------------------------
# Lane-dense flattened path: d_model % 128 != 0
# ---------------------------------------------------------------------------

def _lpe_lane_flattened(x, pos_table, vmem_limit, tile_target):
    B, T, D = x.shape
    L = T * D
    isz = _itemsize(x.dtype)

    xf = x.reshape(B, 1, L)                                # layout plumbing
    pos = pos_table[:T, :].astype(x.dtype).reshape(1, L)   # small: T*D elems

    if L * isz >= tile_target:
        tl = max(128, (tile_target // isz) // 128 * 128)
        bb = 1
    else:
        tl = L                                             # full dim: always legal
        bb = min(B, max(1, tile_target // (L * isz)))

    n_l = pl.cdiv(L, tl)
    n_b = pl.cdiv(B, bb)

    cost = pl.CostEstimate(
        flops=B * L,
        transcendentals=0,
        bytes_accessed=(2 * B * L + L) * isz,
    )

    out = pl.pallas_call(
        _add_pos_kernel,
        out_shape=jax.ShapeDtypeStruct((B, 1, L), x.dtype),
        grid_spec=pltpu.PrefetchScalarGridSpec(
            num_scalar_prefetch=0,
            grid=(n_l, n_b),   # pos re-fetch skipped across inner batch steps
            in_specs=[
                pl.BlockSpec((bb, 1, tl), lambda l, b: (b, 0, l)),
                pl.BlockSpec((1, tl), lambda l, b: (0, l)),
            ],
            out_specs=pl.BlockSpec((bb, 1, tl), lambda l, b: (b, 0, l)),
        ),
        compiler_params=pltpu.CompilerParams(
            dimension_semantics=("parallel", "parallel"),
            vmem_limit_bytes=vmem_limit,
        ),
        cost_estimate=cost,
    )(xf, pos)
    return out.reshape(B, T, D)


# ---------------------------------------------------------------------------
# Public entry point
# ---------------------------------------------------------------------------

def learned_positional_encoding(x: jax.Array, pos_table: jax.Array) -> jax.Array:
    """x: [B, T, D], pos_table: [context_len, D] -> x + pos_table[:T] (broadcast over batch)."""
    B, T, D = x.shape
    context_len, d_model = pos_table.shape
    assert d_model == D, f"d_model mismatch: table has {d_model}, x has {D}"
    assert T <= context_len, f"seq_len {T} exceeds context_len {context_len}"
    # TODO(synk): training-mode dropout on pos (fuse pltpu.prng_seed /
    # prng_random_bits masking with 1/(1-p) scaling into this same HBM pass);
    # eval-mode dropout is identity. Output dtype follows x (pos cast to
    # x.dtype), a deliberate choice vs PyTorch's type-promoted add.

    vmem_limit, tile_target = _vmem_budget()
    if D % 128 == 0:
        return _lpe_lane_aligned(x, pos_table, vmem_limit, tile_target)
    return _lpe_lane_flattened(x, pos_table, vmem_limit, tile_target)


if __name__ == "__main__":
    key = jax.random.PRNGKey(0)
    k1, k2, k3, k4 = jax.random.split(key, 4)

    # Case 1: small d_model (exercises the lane-dense flattened path),
    # consistent with the module: batch=2, seq=8, d_model=32, context_len=16.
    B, T, D, C = 2, 8, 32, 16
    x = jax.random.normal(k1, (B, T, D), dtype=jnp.float32)
    pos_table = jax.random.normal(k2, (C, D), dtype=jnp.float32)
    out = jax.block_until_ready(learned_positional_encoding(x, pos_table))
    ref = x + pos_table[:T][None, :, :]
    assert out.shape == (B, T, D) and out.dtype == x.dtype
    assert jnp.allclose(out, ref, atol=1e-6), "mismatch vs reference (flattened path)"

    # Case 2: lane-aligned d_model (exercises direct table indexing with a
    # partial, sublane-rounded seq block: T=12 -> tt=16 reads table rows >= T).
    B2, T2, D2, C2 = 2, 12, 128, 16
    x2 = jax.random.normal(k3, (B2, T2, D2), dtype=jnp.float32)
    pos_table2 = jax.random.normal(k4, (C2, D2), dtype=jnp.float32)
    out2 = jax.block_until_ready(learned_positional_encoding(x2, pos_table2))
    ref2 = x2 + pos_table2[:T2][None, :, :]
    assert out2.shape == (B2, T2, D2) and out2.dtype == x2.dtype
    assert jnp.allclose(out2, ref2, atol=1e-6), "mismatch vs reference (aligned path)"

    print("KERNEL_OK")
</pallas_src>

<mosaic_0001>
module attributes {stable_mosaic.version = 11 : i64} {
  func.func @_add_pos_kernel(%arg0: i32, %arg1: i32, %arg2: memref<2x1x256xf32, #tpu.memory_space<vmem>>, %arg3: memref<1x256xf32, #tpu.memory_space<vmem>>, %arg4: memref<2x1x256xf32, #tpu.memory_space<vmem>>) attributes {dimension_semantics = [#tpu.dimension_semantics<parallel>, #tpu.dimension_semantics<parallel>], iteration_bounds = array<i64: 1, 1>, scalar_prefetch = 0 : i64, scratch_operands = 0 : i64, tpu.core_type = #tpu.core_type<tc>, window_params = [{transform_indices = @transform_0, window_bounds = array<i64: 2, 1, 256>}, {transform_indices = @transform_1, window_bounds = array<i64: 1, 256>}, {transform_indices = @transform_2, window_bounds = array<i64: 2, 1, 256>}]} {
    %c0 = arith.constant 0 : index
    %c0_0 = arith.constant 0 : index
    %c0_1 = arith.constant 0 : index
    %0 = vector.load %arg2[%c0, %c0_0, %c0_1] : memref<2x1x256xf32, #tpu.memory_space<vmem>>, vector<2x1x256xf32>
    %c0_2 = arith.constant 0 : index
    %c0_3 = arith.constant 0 : index
    %1 = vector.load %arg3[%c0_2, %c0_3] : memref<1x256xf32, #tpu.memory_space<vmem>>, vector<1x256xf32>
    %2 = vector.shape_cast %1 : vector<1x256xf32> to vector<1x1x256xf32>
    %3 = vector.broadcast %2 : vector<1x1x256xf32> to vector<2x1x256xf32>
    %4 = arith.addf %0, %3 : vector<2x1x256xf32>
    %c0_4 = arith.constant 0 : index
    %c0_5 = arith.constant 0 : index
    %c0_6 = arith.constant 0 : index
    %5 = vector.load %arg4[%c0_4, %c0_5, %c0_6] : memref<2x1x256xf32, #tpu.memory_space<vmem>>, vector<2x1x256xf32>
    tpu.vector_store %arg4[%c0_4, %c0_5, %c0_6], %4 {strides = array<i32>} : memref<2x1x256xf32, #tpu.memory_space<vmem>>, vector<2x1x256xf32>,
    return
  }
  func.func @transform_0(%arg0: i32, %arg1: i32) -> (i32, i32, i32) {
    %c0_i32 = arith.constant 0 : i32
    %c0_i32_0 = arith.constant 0 : i32
    return %arg1, %c0_i32, %arg0 : i32, i32, i32
  }
  func.func @transform_1(%arg0: i32, %arg1: i32) -> (i32, i32) {
    %c0_i32 = arith.constant 0 : i32
    %c0_i32_0 = arith.constant 0 : i32
    return %c0_i32, %arg0 : i32, i32
  }
  func.func @transform_2(%arg0: i32, %arg1: i32) -> (i32, i32, i32) {
    %c0_i32 = arith.constant 0 : i32
    %c0_i32_0 = arith.constant 0 : i32
    return %arg1, %c0_i32, %arg0 : i32, i32, i32
  }
}

</mosaic_0001>

<llo_original>
// kernel: tpu_custom_call.1
$region0: #{tpu_custom_call.1}
  #allocation0 [shape = 'u32[]', space=smem, size = 0x4, offset = 0x4, fixed_abs, tag = 'smem constant byte address 0x4 - core index']
  #allocation1 [shape = 'u32[144,128]{1,0:T(1,128)}', space=vmem, size = 0x12000, scoped, tag = 'internal scratch']
  %s0 = inlined_call_operand.hbm [shape: f32[2,1,256], index: 0, kind: input, shape index: {}]
  %s1 = inlined_call_operand.vmem [shape: f32[1,256], index: 1, kind: input, shape index: {}]
  %s2 = inlined_call_operand.hbm [shape: f32[2,1,256], index: 2, kind: output, shape index: {}]
  %s3 = sld [smem:[#allocation0]]
  $region22: #{tpu_custom_call.1} parent=0
    _
  %s5 = ssub.s32 1, %s3
  %s6 = scalar_select 0, %s5, %s3
  $region1: #{tpu_custom_call.1} parent=0
    #allocation2 [shape = 'u8[2048]{0}', space=vmem, size = 0x800, scoped, tag = 'input window, operand 0, single buffered']
    #allocation3 [shape = 's32[1]{0}', space=sflag, size = 0x4, scoped, tag = 'scoped memory for tpu_custom_call.1']
    #allocation4 [shape = 's32[1]{0}', space=sflag, size = 0x4, scoped, tag = 'scoped memory for tpu_custom_call.1']
    #allocation5 [shape = 'u8[2048]{0}', space=vmem, size = 0x800, scoped, tag = 'output window, operand 0, single buffered']
    %7 = vsyncpa [#allocation3], 0
    %8 = vsyncpa [#allocation4], 0
    // Predicated region
    $region2: #{tpu_custom_call.1} parent=1 // pred_check
      _
    $region3: #{tpu_custom_call.1} parent=1 // pred_check_branch
      %10 = sbr.rel (0) target = $region5
    $region4: #{tpu_custom_call.1} parent=1 // pred_region
      %s12 = ssub.s32 64, 64
      %13 = vsyncadd [#allocation3], %s12
      %s14 = sshll.u32 [#allocation2], 4
      %s15 = int_to_ptr.vmem [resolvable:$true] %s14
      %20 = dma.hbm_to_vmem [thread:$0]  %s0, 64, %s15, [#allocation3], 32, 32, 2
    $region5: #{tpu_custom_call.1} parent=1 // pred_fallthru
      _
    // Predicated region
    $region6: #{tpu_custom_call.1} parent=1 // pred_check
      _
    $region7: #{tpu_custom_call.1} parent=1 // pred_check_branch
      %22 = sbr.rel (0) target = $region9
    $region8: #{tpu_custom_call.1} parent=1 // pred_region
      _
    $region9: #{tpu_custom_call.1} parent=1 // pred_fallthru
      _
    // Predicated region
    $region10: #{tpu_custom_call.1} parent=1 // pred_check
      _
    $region11: #{tpu_custom_call.1} parent=1 // pred_check_branch
      %24 = sbr.rel (0) target = $region13
    $region12: #{tpu_custom_call.1} parent=1 // pred_region
      %25 = dma.done [#allocation3], 64
    $region13: #{tpu_custom_call.1} parent=1 // pred_fallthru
      _
    %v26 = vld [vmem:[#allocation2] sm:$0x3]
    %v27 = vld [vmem:[#allocation2 + $0x2] sm:$0x3]
    %v28 = vld [vmem:[%s1] sm:$0x3]
    %v29 = vadd.f32 %v26, %v28
    %v30 = vadd.f32 %v27, %v28
    %v31 = vlaneseq
    %vm32 = vcmp.ge.s32.totalorder %v31, 0
    %vm33 = vcmp.lt.s32.totalorder %v31, 256
    %vm34 = vmand %vm32, %vm33
    %35 = vst.msk [vmem:[#allocation5] sm:$0x3] %vm34, %v29
    %36 = vst.msk [vmem:[#allocation5 + $0x2] sm:$0x3] %vm34, %v30
    // Predicated region
    $region14: #{tpu_custom_call.1} parent=1 // pred_check
      _
    $region15: #{tpu_custom_call.1} parent=1 // pred_check_branch
      %38 = sbr.rel (0) target = $region17
    $region16: #{tpu_custom_call.1} parent=1 // pred_region
      %s40 = ssub.s32 64, 64
      %41 = vsyncadd [#allocation4], %s40
      %s42 = sshll.u32 [#allocation5], 4
      %s43 = int_to_ptr.vmem [resolvable:$true] %s42
      %48 = dma.vmem_to_hbm [thread:$0]  %s43, 64, %s2, [#allocation4], 32, 32, 2
    $region17: #{tpu_custom_call.1} parent=1 // pred_fallthru
      _
    // Predicated region
    $region18: #{tpu_custom_call.1} parent=1 // pred_check
      _
    $region19: #{tpu_custom_call.1} parent=1 // pred_check_branch
      %50 = sbr.rel (0) target = $region21
    $region20: #{tpu_custom_call.1} parent=1 // pred_region
      %51 = dma.done [#allocation4], 64
    $region21: #{tpu_custom_call.1} parent=1 // pred_fallthru
      _
    %52 = vsyncpa [#allocation3], 1
    %53 = vsyncpa [#allocation4], 1

</llo_original>
